<compile_context>
chip_gen: v7x
topology: tpu7x:2x2x1
jax: 0.10.0
libtpu: 0.0.40
codegen_flags: <defaults>
</compile_context>

<pallas_src>
import functools

import jax
import jax.numpy as jnp
from jax.experimental import pallas as pl
from jax.experimental.pallas import tpu as pltpu


# ---------------------------------------------------------------------------
# Kernel 1: fused node embedding + symmetric edge-MLP projection
#   p = relu(X @ W_emb + b_emb) @ w_sym                         -> (TM, 1)
# ---------------------------------------------------------------------------
def _node_proj_kernel(x_ref, w_ref, b_ref, ws_ref, p_ref):
    h = jnp.dot(x_ref[...], w_ref[...], preferred_element_type=jnp.float32)
    h = jnp.maximum(h + b_ref[...], 0.0)                        # (TM, H)
    p_ref[...] = jnp.dot(h, ws_ref[...],
                         preferred_element_type=jnp.float32)    # (TM, 1)


def node_projection(x, w_emb, b_emb, w_sym, *, tile_m=512):
    n, d = x.shape
    h_dim = w_emb.shape[1]

    # pad rows to a multiple of the row tile (tile is a multiple of 8)
    n_pad = ((n + 7) // 8) * 8
    tm = min(tile_m, n_pad)
    n_pad = ((n_pad + tm - 1) // tm) * tm
    if n_pad != n:
        x = jnp.pad(x, ((0, n_pad - n), (0, 0)))

    p = pl.pallas_call(
        _node_proj_kernel,
        out_shape=jax.ShapeDtypeStruct((n_pad, 1), jnp.float32),
        grid=(n_pad // tm,),
        in_specs=[
            pl.BlockSpec((tm, d), lambda i: (i, 0)),            # X row tile
            pl.BlockSpec((d, h_dim), lambda i: (0, 0)),         # W_emb resident
            pl.BlockSpec((1, h_dim), lambda i: (0, 0)),         # b_emb resident
            pl.BlockSpec((h_dim, 1), lambda i: (0, 0)),         # w_sym resident
        ],
        out_specs=pl.BlockSpec((tm, 1), lambda i: (i, 0)),
        compiler_params=pltpu.CompilerParams(
            dimension_semantics=("parallel",)),
    )(x.astype(jnp.float32), w_emb.astype(jnp.float32),
      b_emb.reshape(1, h_dim).astype(jnp.float32),
      w_sym.astype(jnp.float32))
    return p.reshape(n_pad)[:n]


# ---------------------------------------------------------------------------
# Kernel 2: fused gumbel/concrete gate (pure elementwise, lane-dense layout)
#   eps   = scale * u + shift
#   noise = log(eps) - log(1 - eps)        (EUP; matches reference exactly)
#   out   = sigmoid((noise + raw) * inv_T)
# ---------------------------------------------------------------------------
def _edge_gate_kernel(raw_ref, u_ref, o_ref, *, scale, shift, inv_temp):
    eps = u_ref[...] * scale + shift
    noise = jnp.log(eps) - jnp.log(1.0 - eps)
    o_ref[...] = jax.nn.sigmoid((noise + raw_ref[...]) * inv_temp)


def edge_gate(raw, noise_u, *, temperature, bias, tile_rows=256):
    e = raw.shape[0]
    lanes = 128

    rows = -(-e // lanes)
    rows = ((rows + 7) // 8) * 8                 # multiple of 8 sublanes
    tr = min(tile_rows, rows)                    # row tile (multiple of 8)
    rows = ((rows + tr - 1) // tr) * tr
    e_pad = rows * lanes

    raw2 = jnp.pad(raw, (0, e_pad - e)).reshape(rows, lanes)
    u2 = jnp.pad(noise_u, (0, e_pad - e),
                 constant_values=0.5).reshape(rows, lanes)

    out = pl.pallas_call(
        functools.partial(
            _edge_gate_kernel,
            scale=float(bias - (1.0 - bias)),
            shift=float(1.0 - bias),
            inv_temp=float(1.0 / temperature)),
        out_shape=jax.ShapeDtypeStruct((rows, lanes), jnp.float32),
        grid=(rows // tr,),
        in_specs=[pl.BlockSpec((tr, lanes), lambda i: (i, 0)),
                  pl.BlockSpec((tr, lanes), lambda i: (i, 0))],
        out_specs=pl.BlockSpec((tr, lanes), lambda i: (i, 0)),
        compiler_params=pltpu.CompilerParams(
            dimension_semantics=("parallel",)),
    )(raw2, u2)
    return out.reshape(e_pad)[:e]


# ---------------------------------------------------------------------------
# Discriminator forward (Pallas-backed)
# ---------------------------------------------------------------------------
@functools.partial(jax.jit, static_argnames=("temperature", "bias"))
def discriminator_forward(params, embedding, edges, noise_u,
                          temperature=1.0, bias=0.0001):
    h_dim = params["w_emb"].shape[1]
    w_edge = params["w_edge"]                                   # (2H, 1)
    # symmetric collapse: (s1+s2)/2 == (h0+h1) @ w_sym + b_edge
    w_sym = 0.5 * (w_edge[:h_dim, :] + w_edge[h_dim:, :])       # (H, 1)

    # per-node projection (Pallas kernel 1)
    p = node_projection(embedding, params["w_emb"], params["b_emb"],
                        w_sym)                                  # (N,)

    # tiny (E,) gather of scalars + edge bias — plain-JAX glue
    # TODO(synk): for very large E, fuse this gather into kernel 2 via a
    # VMEM-resident p + in-kernel index gather.
    raw = (jnp.take(p, edges[0], axis=0)
           + jnp.take(p, edges[1], axis=0)
           + params["b_edge"][0])

    # fused eps-affine + logit-noise + sigmoid gate (Pallas kernel 2)
    return edge_gate(raw, noise_u, temperature=temperature, bias=bias)


# TODO(synk): cal_loss_dis / decoder are training-time losses, not part of
# forward(), so they are not implemented here.


if __name__ == "__main__":
    key = jax.random.PRNGKey(0)
    k1, k2, k3, k4, k5, k6, k7 = jax.random.split(key, 7)

    N, INPUT_DIM, HIDDEN_DIM, E = 64, 16, 32, 300

    params = {
        "w_emb": jax.random.normal(k1, (INPUT_DIM, HIDDEN_DIM), jnp.float32) * 0.1,
        "b_emb": jax.random.normal(k2, (HIDDEN_DIM,), jnp.float32) * 0.1,
        "w_edge": jax.random.normal(k3, (2 * HIDDEN_DIM, 1), jnp.float32) * 0.1,
        "b_edge": jax.random.normal(k4, (1,), jnp.float32) * 0.1,
    }

    embedding = jax.random.normal(k5, (N, INPUT_DIM), jnp.float32)
    edges = jax.random.randint(k6, (2, E), 0, N, dtype=jnp.int32)
    noise_u = jax.random.uniform(k7, (E,), jnp.float32)  # stands in for torch.rand

    weights = discriminator_forward(params, embedding, edges, noise_u,
                                    temperature=1.0, bias=0.0001)
    weights = jax.block_until_ready(weights)

    # sanity: reference in plain JAX, written exactly like the PyTorch module
    h_ref = jnp.maximum(embedding @ params["w_emb"] + params["b_emb"], 0.0)
    cat1 = jnp.concatenate([h_ref[edges[0]], h_ref[edges[1]]], axis=1)
    cat2 = jnp.concatenate([h_ref[edges[1]], h_ref[edges[0]]], axis=1)
    s1 = (cat1 @ params["w_edge"]).ravel() + params["b_edge"][0]
    s2 = (cat2 @ params["w_edge"]).ravel() + params["b_edge"][0]
    raw_ref = (s1 + s2) / 2.0
    eps_ref = (0.0001 - 0.9999) * noise_u + 0.9999
    ref = jax.nn.sigmoid((jnp.log(eps_ref) - jnp.log(1.0 - eps_ref) + raw_ref) / 1.0)

    assert weights.shape == (E,)
    assert jnp.allclose(weights, ref, atol=1e-4), (weights, ref)

    print("KERNEL_OK")
</pallas_src>

<mosaic_0001>
module attributes {stable_mosaic.version = 11 : i64} {
  func.func @_node_proj_kernel(%arg0: i32, %arg1: memref<64x16xf32, #tpu.memory_space<vmem>>, %arg2: memref<16x32xf32, #tpu.memory_space<vmem>>, %arg3: memref<1x32xf32, #tpu.memory_space<vmem>>, %arg4: memref<32x1xf32, #tpu.memory_space<vmem>>, %arg5: memref<64x1xf32, #tpu.memory_space<vmem>>) attributes {dimension_semantics = [#tpu.dimension_semantics<parallel>], iteration_bounds = array<i64: 1>, scalar_prefetch = 0 : i64, scratch_operands = 0 : i64, tpu.core_type = #tpu.core_type<tc>, window_params = [{transform_indices = @transform_0, window_bounds = array<i64: 64, 16>}, {pipeline_mode = #tpu.pipeline_mode<synchronous>, transform_indices = @transform_1, window_bounds = array<i64: 16, 32>}, {pipeline_mode = #tpu.pipeline_mode<synchronous>, transform_indices = @transform_2, window_bounds = array<i64: 1, 32>}, {pipeline_mode = #tpu.pipeline_mode<synchronous>, transform_indices = @transform_3, window_bounds = array<i64: 32, 1>}, {transform_indices = @transform_4, window_bounds = array<i64: 64, 1>}]} {
    %c0 = arith.constant 0 : index
    %c0_0 = arith.constant 0 : index
    %0 = vector.load %arg1[%c0, %c0_0] : memref<64x16xf32, #tpu.memory_space<vmem>>, vector<64x16xf32>
    %c0_1 = arith.constant 0 : index
    %c0_2 = arith.constant 0 : index
    %1 = vector.load %arg2[%c0_1, %c0_2] : memref<16x32xf32, #tpu.memory_space<vmem>>, vector<16x32xf32>
    %cst = arith.constant dense<0.000000e+00> : vector<64x32xf32>
    %2 = tpu.matmul %0, %1, %cst {dimension_numbers = #tpu.dot_dimension_numbers<[1], [0], [0], [1], [0, 0, 1, 1], [], []>} : vector<64x16xf32>, vector<16x32xf32>, vector<64x32xf32> -> vector<64x32xf32>
    %c0_3 = arith.constant 0 : index
    %c0_4 = arith.constant 0 : index
    %3 = vector.load %arg3[%c0_3, %c0_4] : memref<1x32xf32, #tpu.memory_space<vmem>>, vector<1x32xf32>
    %4 = vector.broadcast %3 : vector<1x32xf32> to vector<64x32xf32>
    %5 = arith.addf %2, %4 : vector<64x32xf32>
    %cst_5 = arith.constant 0.000000e+00 : f32
    %6 = vector.broadcast %cst_5 : f32 to vector<64x32xf32>
    %7 = arith.maximumf %5, %6 : vector<64x32xf32>
    %c0_6 = arith.constant 0 : index
    %c0_7 = arith.constant 0 : index
    %8 = vector.load %arg4[%c0_6, %c0_7] : memref<32x1xf32, #tpu.memory_space<vmem>>, vector<32x1xf32>
    %cst_8 = arith.constant dense<0.000000e+00> : vector<64x1xf32>
    %9 = tpu.matmul %7, %8, %cst_8 {dimension_numbers = #tpu.dot_dimension_numbers<[1], [0], [0], [1], [0, 0, 1, 1], [], []>} : vector<64x32xf32>, vector<32x1xf32>, vector<64x1xf32> -> vector<64x1xf32>
    %c0_9 = arith.constant 0 : index
    %c0_10 = arith.constant 0 : index
    %10 = vector.load %arg5[%c0_9, %c0_10] : memref<64x1xf32, #tpu.memory_space<vmem>>, vector<64x1xf32>
    tpu.vector_store %arg5[%c0_9, %c0_10], %9 {strides = array<i32>} : memref<64x1xf32, #tpu.memory_space<vmem>>, vector<64x1xf32>,
    return
  }
  func.func @transform_0(%arg0: i32) -> (i32, i32) {
    %c0_i32 = arith.constant 0 : i32
    %c0_i32_0 = arith.constant 0 : i32
    return %arg0, %c0_i32 : i32, i32
  }
  func.func @transform_1(%arg0: i32) -> (i32, i32) {
    %c0_i32 = arith.constant 0 : i32
    %c0_i32_0 = arith.constant 0 : i32
    %c0_i32_1 = arith.constant 0 : i32
    return %c0_i32, %c0_i32_0 : i32, i32
  }
  func.func @transform_2(%arg0: i32) -> (i32, i32) {
    %c0_i32 = arith.constant 0 : i32
    %c0_i32_0 = arith.constant 0 : i32
    %c0_i32_1 = arith.constant 0 : i32
    return %c0_i32, %c0_i32_0 : i32, i32
  }
  func.func @transform_3(%arg0: i32) -> (i32, i32) {
    %c0_i32 = arith.constant 0 : i32
    %c0_i32_0 = arith.constant 0 : i32
    %c0_i32_1 = arith.constant 0 : i32
    return %c0_i32, %c0_i32_0 : i32, i32
  }
  func.func @transform_4(%arg0: i32) -> (i32, i32) {
    %c0_i32 = arith.constant 0 : i32
    %c0_i32_0 = arith.constant 0 : i32
    return %arg0, %c0_i32 : i32, i32
  }
}

module attributes {stable_mosaic.version = 11 : i64} {
  func.func @_edge_gate_kernel(%arg0: i32, %arg1: memref<8x128xf32, #tpu.memory_space<vmem>>, %arg2: memref<8x128xf32, #tpu.memory_space<vmem>>, %arg3: memref<8x128xf32, #tpu.memory_space<vmem>>) attributes {dimension_semantics = [#tpu.dimension_semantics<parallel>], iteration_bounds = array<i64: 1>, scalar_prefetch = 0 : i64, scratch_operands = 0 : i64, tpu.core_type = #tpu.core_type<tc>, window_params = [{transform_indices = @transform_0, window_bounds = array<i64: 8, 128>}, {transform_indices = @transform_1, window_bounds = array<i64: 8, 128>}, {transform_indices = @transform_2, window_bounds = array<i64: 8, 128>}]} {
    %c0 = arith.constant 0 : index
    %c0_0 = arith.constant 0 : index
    %0 = vector.load %arg2[%c0, %c0_0] : memref<8x128xf32, #tpu.memory_space<vmem>>, vector<8x128xf32>
    %cst = arith.constant -9.998000e-01 : f32
    %1 = vector.broadcast %cst : f32 to vector<8x128xf32>
    %2 = arith.mulf %0, %1 : vector<8x128xf32>
    %cst_1 = arith.constant 0.999899983 : f32
    %3 = vector.broadcast %cst_1 : f32 to vector<8x128xf32>
    %4 = arith.addf %2, %3 : vector<8x128xf32>
    %5 = math.log %4 : vector<8x128xf32>
    %cst_2 = arith.constant 1.000000e+00 : f32
    %6 = vector.broadcast %cst_2 : f32 to vector<8x128xf32>
    %7 = arith.subf %6, %4 : vector<8x128xf32>
    %8 = math.log %7 : vector<8x128xf32>
    %9 = arith.subf %5, %8 : vector<8x128xf32>
    %c0_3 = arith.constant 0 : index
    %c0_4 = arith.constant 0 : index
    %10 = vector.load %arg1[%c0_3, %c0_4] : memref<8x128xf32, #tpu.memory_space<vmem>>, vector<8x128xf32>
    %11 = arith.addf %9, %10 : vector<8x128xf32>
    %cst_5 = arith.constant 1.000000e+00 : f32
    %12 = vector.broadcast %cst_5 : f32 to vector<8x128xf32>
    %13 = arith.mulf %11, %12 : vector<8x128xf32>
    %14 = arith.negf %13 : vector<8x128xf32>
    %15 = math.exp %14 : vector<8x128xf32>
    %cst_6 = arith.constant 1.000000e+00 : f32
    %16 = vector.broadcast %cst_6 : f32 to vector<8x128xf32>
    %17 = arith.addf %16, %15 : vector<8x128xf32>
    %18 = arith.divf %16, %17 : vector<8x128xf32>
    %c0_7 = arith.constant 0 : index
    %c0_8 = arith.constant 0 : index
    %19 = vector.load %arg3[%c0_7, %c0_8] : memref<8x128xf32, #tpu.memory_space<vmem>>, vector<8x128xf32>
    tpu.vector_store %arg3[%c0_7, %c0_8], %18 {strides = array<i32>} : memref<8x128xf32, #tpu.memory_space<vmem>>, vector<8x128xf32>,
    return
  }
  func.func @transform_0(%arg0: i32) -> (i32, i32) {
    %c0_i32 = arith.constant 0 : i32
    %c0_i32_0 = arith.constant 0 : i32
    return %arg0, %c0_i32 : i32, i32
  }
  func.func @transform_1(%arg0: i32) -> (i32, i32) {
    %c0_i32 = arith.constant 0 : i32
    %c0_i32_0 = arith.constant 0 : i32
    return %arg0, %c0_i32 : i32, i32
  }
  func.func @transform_2(%arg0: i32) -> (i32, i32) {
    %c0_i32 = arith.constant 0 : i32
    %c0_i32_0 = arith.constant 0 : i32
    return %arg0, %c0_i32 : i32, i32
  }
}

</mosaic_0001>

<llo_original>
// kernel: discriminator_forward.3
$region0: #{discriminator_forward.3}
  #allocation0 [shape = 'u32[]', space=smem, size = 0x4, offset = 0x4, fixed_abs, tag = 'smem constant byte address 0x4 - core index']
  #allocation1 [shape = 'u32[144,128]{1,0:T(1,128)}', space=vmem, size = 0x12000, scoped, tag = 'internal scratch']
  %s0 = inlined_call_operand.vmem [shape: f32[8,128], index: 0, kind: input, shape index: {}]
  %s1 = inlined_call_operand.vmem [shape: f32[8,128], index: 1, kind: input, shape index: {}]
  %s2 = inlined_call_operand.vmem [shape: f32[8,128], index: 2, kind: output, shape index: {}]
  %s3 = sld [smem:[#allocation0]]
  $region18: #{discriminator_forward.3} parent=0
    _
  %s5 = ssub.s32 1, %s3
  %s6 = scalar_select 0, %s5, %s3
  // Predicated region
  $region2: #{discriminator_forward.3} parent=0 // pred_check
    _
  $region3: #{discriminator_forward.3} parent=0 // pred_check_branch
    %8 = sbr.rel (0) target = $region5
  $region4: #{discriminator_forward.3} parent=0 // pred_region
    _
  $region5: #{discriminator_forward.3} parent=0 // pred_fallthru
    _
  // Predicated region
  $region6: #{discriminator_forward.3} parent=0 // pred_check
    _
  $region7: #{discriminator_forward.3} parent=0 // pred_check_branch
    %10 = sbr.rel (0) target = $region9
  $region8: #{discriminator_forward.3} parent=0 // pred_region
    _
  $region9: #{discriminator_forward.3} parent=0 // pred_fallthru
    _
  %v11 = vld [vmem:[%s1] sm:$0xff]
  %v12 = vmul.f32 %v11, -0.9998
  %v13 = vadd.f32 %v12, 0.9999
  %v14 = vlog2.pop %v13
  %v15 = vmul.f32 %v14, 0.6931472
  %v16 = vsub.f32 1.0, %v13
  %v17 = vlog2.pop %v16
  %v18 = vmul.f32 %v17, 0.6931472
  %v19 = vsub.f32 %v15, %v18
  %v20 = vld [vmem:[%s0] sm:$0xff]
  %v21 = vadd.f32 %v19, %v20
  %v22 = vxor.u32 %v21, 2147483648
  %v23 = vmul.f32 %v22, 1.442695
  %v24 = vpow.pop %v23
  %v25 = vadd.f32 %v24, 1.0
  %v26 = vrcp.pop %v25
  %v27 = vmul.f32 1.0, %v26
  %28 = vst [vmem:[%s2] sm:$0xff] %v27
  // Predicated region
  $region10: #{discriminator_forward.3} parent=0 // pred_check
    _
  $region11: #{discriminator_forward.3} parent=0 // pred_check_branch
    %30 = sbr.rel (0) target = $region13
  $region12: #{discriminator_forward.3} parent=0 // pred_region
    _
  $region13: #{discriminator_forward.3} parent=0 // pred_fallthru
    _
  // Predicated region
  $region14: #{discriminator_forward.3} parent=0 // pred_check
    _
  $region15: #{discriminator_forward.3} parent=0 // pred_check_branch
    %32 = sbr.rel (0) target = $region17
  $region16: #{discriminator_forward.3} parent=0 // pred_region
    _
  $region17: #{discriminator_forward.3} parent=0 // pred_fallthru
    _

// kernel: discriminator_forward.2
$region0: #{discriminator_forward.2}
  #allocation0 [shape = 'u32[]', space=smem, size = 0x4, offset = 0x4, fixed_abs, tag = 'smem constant byte address 0x4 - core index']
  #allocation1 [shape = 'u32[144,128]{1,0:T(1,128)}', space=vmem, size = 0x12000, scoped, tag = 'internal scratch']
  %s0 = inlined_call_operand.vmem [shape: f32[64,16], index: 0, kind: input, shape index: {}]
  %s1 = inlined_call_operand.vmem [shape: f32[16,32], index: 1, kind: input, shape index: {}]
  %s2 = inlined_call_operand.vmem [shape: f32[1,32], index: 2, kind: input, shape index: {}]
  %s3 = inlined_call_operand.vmem [shape: f32[32,1], index: 3, kind: input, shape index: {}]
  %s4 = inlined_call_operand.vmem [shape: f32[64,1], index: 4, kind: output, shape index: {}]
  %s5 = sld [smem:[#allocation0]]
  $region26: #{discriminator_forward.2} parent=0
    _
  %s7 = ssub.s32 1, %s5
  %s8 = scalar_select 0, %s7, %s5
  // Predicated region
  $region2: #{discriminator_forward.2} parent=0 // pred_check
    _
  $region3: #{discriminator_forward.2} parent=0 // pred_check_branch
    %10 = sbr.rel (0) target = $region5
  $region4: #{discriminator_forward.2} parent=0 // pred_region
    _
  $region5: #{discriminator_forward.2} parent=0 // pred_fallthru
    _
  // Predicated region
  $region6: #{discriminator_forward.2} parent=0 // pred_check
    _
  $region7: #{discriminator_forward.2} parent=0 // pred_check_branch
    %12 = sbr.rel (0) target = $region9
  $region8: #{discriminator_forward.2} parent=0 // pred_region
    _
  $region9: #{discriminator_forward.2} parent=0 // pred_fallthru
    _
  // Predicated region
  $region10: #{discriminator_forward.2} parent=0 // pred_check
    _
  $region11: #{discriminator_forward.2} parent=0 // pred_check_branch
    %14 = sbr.rel (0) target = $region13
  $region12: #{discriminator_forward.2} parent=0 // pred_region
    _
  $region13: #{discriminator_forward.2} parent=0 // pred_fallthru
    _
  // Predicated region
  $region14: #{discriminator_forward.2} parent=0 // pred_check
    _
  $region15: #{discriminator_forward.2} parent=0 // pred_check_branch
    %16 = sbr.rel (0) target = $region17
  $region16: #{discriminator_forward.2} parent=0 // pred_region
    _
  $region17: #{discriminator_forward.2} parent=0 // pred_fallthru
    _
  %v17 = vld [vmem:[%s0] sm:$0xff]
  %v18 = vld [vmem:[%s0 + $0x8] sm:$0xff]
  %v19 = vld [vmem:[%s0 + $0x10] sm:$0xff]
  %v20 = vld [vmem:[%s0 + $0x18] sm:$0xff]
  %v21 = vld [vmem:[%s0 + $0x20] sm:$0xff]
  %v22 = vld [vmem:[%s0 + $0x28] sm:$0xff]
  %v23 = vld [vmem:[%s0 + $0x30] sm:$0xff]
  %v24 = vld [vmem:[%s0 + $0x38] sm:$0xff]
  %v25 = vld [vmem:[%s1] sm:$0xff]
  %v26 = vld [vmem:[%s1 + $0x8] sm:$0xff]
  %v27 = vld [vmem:[%s2] sm:$0x1]
  %v29 = vlaneseq
  %v30 = vshrl.u32 %v29, 7
  %v31 = vsub.s32 0, %v30
  %v32 = vrot.slane %v27, %v31
  %vm34 = vcmask 130048
  %v36 = vsel %vm34, %v17, 0
  %v39 = vsel %vm34, %v18, 0
  %v42 = vsel %vm34, %v19, 0
  %v45 = vsel %vm34, %v20, 0
  %v48 = vsel %vm34, %v21, 0
  %v51 = vsel %vm34, %v22, 0
  %v54 = vsel %vm34, %v23, 0
  %v57 = vsel %vm34, %v24, 0
  %59 = vmatprep.subr.mxu0 0.0
  %60 = vmatpush1.msra.mxu0 %v25
  %61 = vmatprep.subr.mxu0 0.0
  %62 = vmatpush1.msra.mxu0 %v26
  %63 = vmatprep.subr.mxu0 0.0
  %64 = vmatpush1.msra.mxu0 0.0
  %65 = vmatprep.subr.mxu0 0.0
  %66 = vmatpush1.msra.mxu0 0.0
  %67 = vmatprep.subr.mxu0 0.0
  %68 = vmatpush1.msra.mxu0 0.0
  %69 = vmatprep.subr.mxu0 0.0
  %70 = vmatpush1.msra.mxu0 0.0
  %71 = vmatprep.subr.mxu0 0.0
  %72 = vmatpush1.msra.mxu0 0.0
  %73 = vmatprep.subr.mxu0 0.0
  %74 = vmatpush1.msra.mxu0 0.0
  %75 = vmatprep.subr.mxu0 0.0
  %76 = vmatpush1.msra.mxu0 0.0
  %77 = vmatprep.subr.mxu0 0.0
  %78 = vmatpush1.msra.mxu0 0.0
  %79 = vmatprep.subr.mxu0 0.0
  %80 = vmatpush1.msra.mxu0 0.0
  %81 = vmatprep.subr.mxu0 0.0
  %82 = vmatpush1.msra.mxu0 0.0
  %83 = vmatprep.subr.mxu0 0.0
  %84 = vmatpush1.msra.mxu0 0.0
  %85 = vmatprep.subr.mxu0 0.0
  %86 = vmatpush1.msra.mxu0 0.0
  %87 = vmatprep.subr.mxu0 0.0
  %88 = vmatpush1.msra.mxu0 0.0
  %89 = vmatprep.subr.mxu0 0.0
  %90 = vmatpush1.msra.mxu0 0.0
  %91 = vmatprep.subr.mxu0 0.0
  %92 = vmatpush1.msra.mxu0 0.0
  %93 = vmatprep.subr.mxu0 0.0
  %94 = vmatpush1.msra.mxu0 0.0
  %95 = vmatprep.subr.mxu0 0.0
  %96 = vmatpush1.msra.mxu0 0.0
  %97 = vmatprep.subr.mxu0 0.0
  %98 = vmatpush1.msra.mxu0 0.0
  %99 = vmatprep.subr.mxu0 0.0
  %100 = vmatpush1.msra.mxu0 0.0
  %101 = vmatprep.subr.mxu0 0.0
  %102 = vmatpush1.msra.mxu0 0.0
  %103 = vmatprep.subr.mxu0 0.0
  %104 = vmatpush1.msra.mxu0 0.0
  %105 = vmatprep.subr.mxu0 0.0
  %106 = vmatpush1.msra.mxu0 0.0
  %107 = vmatprep.subr.mxu0 0.0
  %108 = vmatpush1.msra.mxu0 0.0
  %109 = vmatprep.subr.mxu0 0.0
  %110 = vmatpush1.msra.mxu0 0.0
  %111 = vmatprep.subr.mxu0 0.0
  %112 = vmatpush1.msra.mxu0 0.0
  %113 = vmatprep.subr.mxu0 0.0
  %114 = vmatpush1.msra.mxu0 0.0
  %115 = vmatprep.subr.mxu0 0.0
  %116 = vmatpush1.msra.mxu0 0.0
  %117 = vmatprep.subr.mxu0 0.0
  %118 = vmatpush1.msra.mxu0 0.0
  %119 = vmatprep.subr.mxu0 0.0
  %120 = vmatpush1.msra.mxu0 0.0
  %121 = vmatprep.subr.mxu0 0.0
  %122 = vmatpush1.msra.mxu0 0.0
  %123 = vmatprep.mubr.f32.mxu0 0.0
  %124 = vmatmul.mubr.f32.gmra.mrb[0].mxu0 %v36
  %v125 = vpop.f32.mrb[0].mxu0
  %v126 = vadd.f32 %v32, %v125
  %v127 = vpop.f32.mrb[0].mxu0
  %128 = vmatprep.mubr.f32.mxu0 0.0
  %129 = vmatmul.mubr.f32.gmra.mrb[0].mxu0 %v39
  %v130 = vpop.f32.mrb[0].mxu0
  %v131 = vadd.f32 %v32, %v130
  %v132 = vpop.f32.mrb[0].mxu0
  %133 = vmatprep.mubr.f32.mxu0 0.0
  %134 = vmatmul.mubr.f32.gmra.mrb[0].mxu0 %v42
  %v135 = vpop.f32.mrb[0].mxu0
  %v136 = vadd.f32 %v32, %v135
  %v137 = vpop.f32.mrb[0].mxu0
  %138 = vmatprep.mubr.f32.mxu0 0.0
  %139 = vmatmul.mubr.f32.gmra.mrb[0].mxu0 %v45
  %v140 = vpop.f32.mrb[0].mxu0
  %v141 = vadd.f32 %v32, %v140
  %v142 = vpop.f32.mrb[0].mxu0
  %143 = vmatprep.mubr.f32.mxu0 0.0
  %144 = vmatmul.mubr.f32.gmra.mrb[0].mxu0 %v48
  %v145 = vpop.f32.mrb[0].mxu0
  %v146 = vadd.f32 %v32, %v145
  %v147 = vpop.f32.mrb[0].mxu0
  %148 = vmatprep.mubr.f32.mxu0 0.0
  %149 = vmatmul.mubr.f32.gmra.mrb[0].mxu0 %v51
  %v150 = vpop.f32.mrb[0].mxu0
  %v151 = vadd.f32 %v32, %v150
  %v152 = vpop.f32.mrb[0].mxu0
  %153 = vmatprep.mubr.f32.mxu0 0.0
  %154 = vmatmul.mubr.f32.gmra.mrb[0].mxu0 %v54
  %v155 = vpop.f32.mrb[0].mxu0
  %v156 = vadd.f32 %v32, %v155
  %v157 = vpop.f32.mrb[0].mxu0
  %158 = vmatprep.mubr.f32.mxu0 0.0
  %159 = vmatmul.mubr.f32.gmra.mrb[0].mxu0 %v57
  %v160 = vpop.f32.mrb[0].mxu0
  %v161 = vadd.f32 %v32, %v160
  %v162 = vpop.f32.mrb[0].mxu0
  %163 = vdwg.mxu0
  %v164 = vmax.f32 %v126, 0.0
  %v165 = vmax.f32 %v131, 0.0
  %v166 = vmax.f32 %v136, 0.0
  %v167 = vmax.f32 %v141, 0.0
  %v168 = vmax.f32 %v146, 0.0
  %v169 = vmax.f32 %v151, 0.0
  %v170 = vmax.f32 %v156, 0.0
  %v171 = vmax.f32 %v161, 0.0
  %v172 = vld [vmem:[%s3] sm:$0xff]
  %v173 = vld [vmem:[%s3 + $0x8] sm:$0xff]
  %v174 = vld [vmem:[%s3 + $0x10] sm:$0xff]
  %v175 = vld [vmem:[%s3 + $0x18] sm:$0xff]
  %vm176 = vcmask 261120
  %v178 = vsel %vm176, %v164, 0
  %v181 = vsel %vm176, %v165, 0
  %v184 = vsel %vm176, %v166, 0
  %v187 = vsel %vm176, %v167, 0
  %v190 = vsel %vm176, %v168, 0
  %v193 = vsel %vm176, %v169, 0
  %v196 = vsel %vm176, %v170, 0
  %v199 = vsel %vm176, %v171, 0
  %201 = vmatprep.subr.mxu0 0.0
  %202 = vmatpush1.msra.mxu0 %v172
  %203 = vmatprep.subr.mxu0 0.0
  %204 = vmatpush1.msra.mxu0 %v173
  %205 = vmatprep.subr.mxu0 0.0
  %206 = vmatpush1.msra.mxu0 %v174
  %207 = vmatprep.subr.mxu0 0.0
  %208 = vmatpush1.msra.mxu0 %v175
  %209 = vmatprep.subr.mxu0 0.0
  %210 = vmatpush1.msra.mxu0 0.0
  %211 = vmatprep.subr.mxu0 0.0
  %212 = vmatpush1.msra.mxu0 0.0
  %213 = vmatprep.subr.mxu0 0.0
  %214 = vmatpush1.msra.mxu0 0.0
  %215 = vmatprep.subr.mxu0 0.0
  %216 = vmatpush1.msra.mxu0 0.0
  %217 = vmatprep.subr.mxu0 0.0
  %218 = vmatpush1.msra.mxu0 0.0
  %219 = vmatprep.subr.mxu0 0.0
  %220 = vmatpush1.msra.mxu0 0.0
  %221 = vmatprep.subr.mxu0 0.0
  %222 = vmatpush1.msra.mxu0 0.0
  %223 = vmatprep.subr.mxu0 0.0
  %224 = vmatpush1.msra.mxu0 0.0
  %225 = vmatprep.subr.mxu0 0.0
  %226 = vmatpush1.msra.mxu0 0.0
  %227 = vmatprep.subr.mxu0 0.0
  %228 = vmatpush1.msra.mxu0 0.0
  %229 = vmatprep.subr.mxu0 0.0
  %230 = vmatpush1.msra.mxu0 0.0
  %231 = vmatprep.subr.mxu0 0.0
  %232 = vmatpush1.msra.mxu0 0.0
  %233 = vmatprep.subr.mxu0 0.0
  %234 = vmatpush1.msra.mxu0 0.0
  %235 = vmatprep.subr.mxu0 0.0
  %236 = vmatpush1.msra.mxu0 0.0
  %237 = vmatprep.subr.mxu0 0.0
  %238 = vmatpush1.msra.mxu0 0.0
  %239 = vmatprep.subr.mxu0 0.0
  %240 = vmatpush1.msra.mxu0 0.0
  %241 = vmatprep.subr.mxu0 0.0
  %242 = vmatpush1.msra.mxu0 0.0
  %243 = vmatprep.subr.mxu0 0.0
  %244 = vmatpush1.msra.mxu0 0.0
  %245 = vmatprep.subr.mxu0 0.0
  %246 = vmatpush1.msra.mxu0 0.0
  %247 = vmatprep.subr.mxu0 0.0
  %248 = vmatpush1.msra.mxu0 0.0
  %249 = vmatprep.subr.mxu0 0.0
  %250 = vmatpush1.msra.mxu0 0.0
  %251 = vmatprep.subr.mxu0 0.0
  %252 = vmatpush1.msra.mxu0 0.0
  %253 = vmatprep.subr.mxu0 0.0
  %254 = vmatpush1.msra.mxu0 0.0
  %255 = vmatprep.subr.mxu0 0.0
  %256 = vmatpush1.msra.mxu0 0.0
  %257 = vmatprep.subr.mxu0 0.0
  %258 = vmatpush1.msra.mxu0 0.0
  %259 = vmatprep.subr.mxu0 0.0
  %260 = vmatpush1.msra.mxu0 0.0
  %261 = vmatprep.subr.mxu0 0.0
  %262 = vmatpush1.msra.mxu0 0.0
  %263 = vmatprep.subr.mxu0 0.0
  %264 = vmatpush1.msra.mxu0 0.0
  %265 = vmatprep.mubr.f32.mxu0 0.0
  %266 = vmatmul.mubr.f32.gmra.mrb[0].mxu0 %v178
  %v267 = vpop.f32.mrb[0].mxu0
  %v268 = vadd.f32 0.0, %v267
  %v269 = vpop.f32.mrb[0].mxu0
  %270 = vmatprep.mubr.f32.mxu0 0.0
  %271 = vmatmul.mubr.f32.gmra.mrb[0].mxu0 %v181
  %v272 = vpop.f32.mrb[0].mxu0
  %v273 = vadd.f32 0.0, %v272
  %v274 = vpop.f32.mrb[0].mxu0
  %275 = vmatprep.mubr.f32.mxu0 0.0
  %276 = vmatmul.mubr.f32.gmra.mrb[0].mxu0 %v184
  %v277 = vpop.f32.mrb[0].mxu0
  %v278 = vadd.f32 0.0, %v277
  %v279 = vpop.f32.mrb[0].mxu0
  %280 = vmatprep.mubr.f32.mxu0 0.0
  %281 = vmatmul.mubr.f32.gmra.mrb[0].mxu0 %v187
  %v282 = vpop.f32.mrb[0].mxu0
  %v283 = vadd.f32 0.0, %v282
  %v284 = vpop.f32.mrb[0].mxu0
  %285 = vmatprep.mubr.f32.mxu0 0.0
  %286 = vmatmul.mubr.f32.gmra.mrb[0].mxu0 %v190
  %v287 = vpop.f32.mrb[0].mxu0
  %v288 = vadd.f32 0.0, %v287
  %v289 = vpop.f32.mrb[0].mxu0
  %290 = vmatprep.mubr.f32.mxu0 0.0
  %291 = vmatmul.mubr.f32.gmra.mrb[0].mxu0 %v193
  %v292 = vpop.f32.mrb[0].mxu0
  %v293 = vadd.f32 0.0, %v292
  %v294 = vpop.f32.mrb[0].mxu0
  %295 = vmatprep.mubr.f32.mxu0 0.0
  %296 = vmatmul.mubr.f32.gmra.mrb[0].mxu0 %v196
  %v297 = vpop.f32.mrb[0].mxu0
  %v298 = vadd.f32 0.0, %v297
  %v299 = vpop.f32.mrb[0].mxu0
  %300 = vmatprep.mubr.f32.mxu0 0.0
  %301 = vmatmul.mubr.f32.gmra.mrb[0].mxu0 %v199
  %v302 = vpop.f32.mrb[0].mxu0
  %v303 = vadd.f32 0.0, %v302
  %v304 = vpop.f32.mrb[0].mxu0
  %305 = vdwg.mxu0
  %vm306 = vcmask 7168
  %307 = vst.msk [vmem:[%s4] sm:$0xff] %vm306, %v268
  %308 = vst.msk [vmem:[%s4 + $0x8] sm:$0xff] %vm306, %v273
  %309 = vst.msk [vmem:[%s4 + $0x10] sm:$0xff] %vm306, %v278
  %310 = vst.msk [vmem:[%s4 + $0x18] sm:$0xff] %vm306, %v283
  %311 = vst.msk [vmem:[%s4 + $0x20] sm:$0xff] %vm306, %v288
  %312 = vst.msk [vmem:[%s4 + $0x28] sm:$0xff] %vm306, %v293
  %313 = vst.msk [vmem:[%s4 + $0x30] sm:$0xff] %vm306, %v298
  %314 = vst.msk [vmem:[%s4 + $0x38] sm:$0xff] %vm306, %v303
  // Predicated region
  $region18: #{discriminator_forward.2} parent=0 // pred_check
    _
  $region19: #{discriminator_forward.2} parent=0 // pred_check_branch
    %316 = sbr.rel (0) target = $region21
  $region20: #{discriminator_forward.2} parent=0 // pred_region
    _
  $region21: #{discriminator_forward.2} parent=0 // pred_fallthru
    _
  // Predicated region
  $region22: #{discriminator_forward.2} parent=0 // pred_check
    _
  $region23: #{discriminator_forward.2} parent=0 // pred_check_branch
    %318 = sbr.rel (0) target = $region25
  $region24: #{discriminator_forward.2} parent=0 // pred_region
    _
  $region25: #{discriminator_forward.2} parent=0 // pred_fallthru
    _

</llo_original>
